<compile_context>
chip_gen: v5e
topology: v5e:2x2
jax: 0.10.0
libtpu: 0.0.40
codegen_flags: <defaults>
</compile_context>

<pallas_src>
import jax
import jax.numpy as jnp
from jax.experimental import pallas as pl
from jax.experimental.pallas import tpu as pltpu


def _round_up(x, m):
    return (x + m - 1) // m * m


def _matmul_bias_kernel(w_ref, p_ref, b_ref, o_ref):
    """One lane-tile of the im2col matmul.

    w_ref: (C_out, K_pad)  full weight matrix (resident across grid steps)
    p_ref: (K_pad, TM)     im2col patch tile (K on sublanes, M on lanes)
    b_ref: (C_out, 1)      bias, broadcast over lanes
    o_ref: (C_out, TM)     output tile (dense, unmasked store)
    """
    acc = jnp.dot(w_ref[...], p_ref[...], preferred_element_type=jnp.float32)
    o_ref[...] = acc + b_ref[...]


def _im2col(x, kh, kw, sh, sw, ph, pw):
    """x: (N, C_in, H, W) -> patches (C_in*KH*KW, N*H_out*W_out).

    Row index k = (c*KH + dh)*KW + dw, matching w.reshape(C_out, C_in*KH*KW).
    Column index m = (n*H_out + oh)*W_out + ow.
    """
    n, c, h, w = x.shape
    h_out = (h + 2 * ph - kh) // sh + 1
    w_out = (w + 2 * pw - kw) // sw + 1
    xp = jnp.pad(x, ((0, 0), (0, 0), (ph, ph), (pw, pw)))
    taps = []
    for dh in range(kh):
        for dw in range(kw):
            sl = jax.lax.slice(
                xp, (0, 0, dh, dw),
                (n, c, dh + (h_out - 1) * sh + 1, dw + (w_out - 1) * sw + 1),
                (1, 1, sh, sw))                        # (N, C_in, H_out, W_out)
            taps.append(sl)
    p = jnp.stack(taps, axis=0).reshape(kh, kw, n, c, h_out, w_out)
    p = jnp.transpose(p, (3, 0, 1, 2, 4, 5))           # (C_in, KH, KW, N, Ho, Wo)
    return p.reshape(c * kh * kw, n * h_out * w_out), h_out, w_out


def conv2d_pallas(x, w, b, stride, padding):
    """PyTorch-semantics Conv2d (cross-correlation, zero padding) via a single
    Pallas im2col matmul.

    x: (N, C_in, H, W), w: (C_out, C_in, KH, KW), b: (C_out,)
    returns (N, C_out, H_out, W_out) float32.
    """
    n, c_in, h, wdt = x.shape
    c_out, _, kh, kw = w.shape
    sh, sw = stride
    ph, pw = padding

    patches, h_out, w_out = _im2col(x.astype(jnp.float32), kh, kw, sh, sw, ph, pw)
    k = c_in * kh * kw
    m = n * h_out * w_out

    # Zero-pad K to a sublane multiple and M to a lane-tile multiple (exact).
    k_pad = _round_up(k, 8)
    tm = min(_round_up(m, 128), 4096)          # lane tile per grid step
    m_pad = _round_up(m, tm)
    patches = jnp.pad(patches, ((0, k_pad - k), (0, m_pad - m)))
    w2d = jnp.pad(w.reshape(c_out, k).astype(jnp.float32), ((0, 0), (0, k_pad - k)))
    b2d = b.reshape(c_out, 1).astype(jnp.float32)

    cost = pl.CostEstimate(
        flops=2 * c_out * k_pad * m_pad,
        transcendentals=0,
        bytes_accessed=4 * (k_pad * m_pad + c_out * k_pad + c_out + c_out * m_pad),
    )

    out = pl.pallas_call(
        _matmul_bias_kernel,
        out_shape=jax.ShapeDtypeStruct((c_out, m_pad), jnp.float32),
        grid_spec=pltpu.PrefetchScalarGridSpec(
            num_scalar_prefetch=0,
            grid=(m_pad // tm,),
            in_specs=[
                pl.BlockSpec((c_out, k_pad), lambda i: (0, 0)),
                pl.BlockSpec((k_pad, tm), lambda i: (0, i)),
                pl.BlockSpec((c_out, 1), lambda i: (0, 0)),
            ],
            out_specs=pl.BlockSpec((c_out, tm), lambda i: (0, i)),
        ),
        compiler_params=pltpu.CompilerParams(
            dimension_semantics=("parallel",),   # lets v7x's 2 TCs split the lane tiles
        ),
        cost_estimate=cost,
    )(w2d, patches, b2d)

    out = out[:, :m].reshape(c_out, n, h_out, w_out)
    return jnp.transpose(out, (1, 0, 2, 3))            # (N, C_out, H_out, W_out)


def conv2d_ref(x, w, b, stride, padding):
    """Pure-JAX reference Conv2d (same semantics as torch.nn.Conv2d)."""
    y = jax.lax.conv_general_dilated(
        x.astype(jnp.float32), w.astype(jnp.float32),
        window_strides=stride,
        padding=[(padding[0], padding[0]), (padding[1], padding[1])],
        dimension_numbers=("NCHW", "OIHW", "NCHW"),
    )
    return y + b.astype(jnp.float32)[None, :, None, None]


def center_pivot_conv4d(x, w1, b1, w2, b2, kernel_size, stride, padding, conv2d):
    """Mirror of CenterPivotConv4d.forward. x: (bsz, inch, ha, wa, hb, wb)."""
    del kernel_size  # implied by weight shapes
    s34 = stride[2:]
    if s34[-1] > 1:
        # prune(): keep every stride34-th (hb, wb) position
        out1_in = x[:, :, :, :, ::s34[0], ::s34[1]]
    else:
        out1_in = x

    bsz, inch, ha, wa, hb_p, wb_p = out1_in.shape
    o1 = jnp.transpose(out1_in, (0, 4, 5, 1, 2, 3)).reshape(-1, inch, ha, wa)
    o1 = conv2d(o1, w1, b1, stride[:2], padding[:2])
    outch, o_ha, o_wa = o1.shape[1], o1.shape[2], o1.shape[3]
    o1 = jnp.transpose(o1.reshape(bsz, hb_p, wb_p, outch, o_ha, o_wa),
                       (0, 3, 4, 5, 1, 2))

    bsz, inch, ha, wa, hb, wb = x.shape
    o2 = jnp.transpose(x, (0, 2, 3, 1, 4, 5)).reshape(-1, inch, hb, wb)
    o2 = conv2d(o2, w2, b2, stride[2:], padding[2:])
    outch, o_hb, o_wb = o2.shape[1], o2.shape[2], o2.shape[3]
    o2 = jnp.transpose(o2.reshape(bsz, ha, wa, outch, o_hb, o_wb),
                       (0, 3, 1, 2, 4, 5))

    if o1.shape[-2:] != o2.shape[-2:] and tuple(padding[-2:]) == (0, 0):
        # Shape-mismatch path of the original module (not hit for the demo config).
        o1 = o1.reshape(bsz, outch, o_ha, o_wa, -1).sum(axis=-1)
        o2 = jnp.squeeze(o2)

    # TODO(synk): the 6-D permutes, prune() slicing and the final o1+o2 add stay as
    # plain XLA ops (pure layout/elementwise plumbing, no kernel-worthy compute).
    return o1 + o2


if __name__ == "__main__":
    key = jax.random.PRNGKey(0)
    k1, k2, k3, k4, k5 = jax.random.split(key, 5)

    # Standard HSNet-style config: 4D kernel (3,3,3,3), stride 1, padding 1.
    bsz, inch, outch = 2, 4, 8
    ha = wa = hb = wb = 8
    kernel_size = (3, 3, 3, 3)
    stride = (1, 1, 1, 1)
    padding = (1, 1, 1, 1)

    x = jax.random.normal(k1, (bsz, inch, ha, wa, hb, wb), dtype=jnp.float32)
    w1 = 0.1 * jax.random.normal(k2, (outch, inch, kernel_size[0], kernel_size[1]), jnp.float32)
    b1 = 0.1 * jax.random.normal(k3, (outch,), jnp.float32)
    w2 = 0.1 * jax.random.normal(k4, (outch, inch, kernel_size[2], kernel_size[3]), jnp.float32)
    b2 = 0.1 * jax.random.normal(k5, (outch,), jnp.float32)

    y = center_pivot_conv4d(x, w1, b1, w2, b2, kernel_size, stride, padding,
                            conv2d=conv2d_pallas)
    y = jax.block_until_ready(y)

    y_ref = center_pivot_conv4d(x, w1, b1, w2, b2, kernel_size, stride, padding,
                                conv2d=conv2d_ref)
    y_ref = jax.block_until_ready(y_ref)

    assert y.shape == (bsz, outch, ha, wa, hb, wb), y.shape
    assert jnp.allclose(y, y_ref, atol=1e-3, rtol=1e-3), float(jnp.max(jnp.abs(y - y_ref)))
    print("KERNEL_OK")
</pallas_src>

<mosaic_0001>
module attributes {stable_mosaic.version = 11 : i64} {
  func.func @_matmul_bias_kernel(%arg0: i32, %arg1: memref<8x40xf32, #tpu.memory_space<vmem>>, %arg2: memref<40x4096xf32, #tpu.memory_space<vmem>>, %arg3: memref<8x1xf32, #tpu.memory_space<vmem>>, %arg4: memref<8x4096xf32, #tpu.memory_space<vmem>>) attributes {dimension_semantics = [#tpu.dimension_semantics<parallel>], iteration_bounds = array<i64: 2>, scalar_prefetch = 0 : i64, scratch_operands = 0 : i64, tpu.core_type = #tpu.core_type<tc>, window_params = [{pipeline_mode = #tpu.pipeline_mode<synchronous>, transform_indices = @transform_0, window_bounds = array<i64: 8, 40>}, {transform_indices = @transform_1, window_bounds = array<i64: 40, 4096>}, {pipeline_mode = #tpu.pipeline_mode<synchronous>, transform_indices = @transform_2, window_bounds = array<i64: 8, 1>}, {transform_indices = @transform_3, window_bounds = array<i64: 8, 4096>}]} {
    %c0 = arith.constant 0 : index
    %c0_0 = arith.constant 0 : index
    %0 = vector.load %arg1[%c0, %c0_0] : memref<8x40xf32, #tpu.memory_space<vmem>>, vector<8x40xf32>
    %c0_1 = arith.constant 0 : index
    %c0_2 = arith.constant 0 : index
    %1 = vector.load %arg2[%c0_1, %c0_2] : memref<40x4096xf32, #tpu.memory_space<vmem>>, vector<40x4096xf32>
    %cst = arith.constant dense<0.000000e+00> : vector<8x4096xf32>
    %2 = tpu.matmul %0, %1, %cst {dimension_numbers = #tpu.dot_dimension_numbers<[1], [0], [0], [1], [0, 0, 1, 1], [], []>} : vector<8x40xf32>, vector<40x4096xf32>, vector<8x4096xf32> -> vector<8x4096xf32>
    %c0_3 = arith.constant 0 : index
    %c0_4 = arith.constant 0 : index
    %3 = vector.load %arg3[%c0_3, %c0_4] : memref<8x1xf32, #tpu.memory_space<vmem>>, vector<8x1xf32>
    %4 = vector.broadcast %3 : vector<8x1xf32> to vector<8x4096xf32>
    %5 = arith.addf %2, %4 : vector<8x4096xf32>
    %c0_5 = arith.constant 0 : index
    %c0_6 = arith.constant 0 : index
    %6 = vector.load %arg4[%c0_5, %c0_6] : memref<8x4096xf32, #tpu.memory_space<vmem>>, vector<8x4096xf32>
    tpu.vector_store %arg4[%c0_5, %c0_6], %5 {strides = array<i32>} : memref<8x4096xf32, #tpu.memory_space<vmem>>, vector<8x4096xf32>,
    return
  }
  func.func @transform_0(%arg0: i32) -> (i32, i32) {
    %c0_i32 = arith.constant 0 : i32
    %c0_i32_0 = arith.constant 0 : i32
    %c0_i32_1 = arith.constant 0 : i32
    return %c0_i32, %c0_i32_0 : i32, i32
  }
  func.func @transform_1(%arg0: i32) -> (i32, i32) {
    %c0_i32 = arith.constant 0 : i32
    %c0_i32_0 = arith.constant 0 : i32
    return %c0_i32, %arg0 : i32, i32
  }
  func.func @transform_2(%arg0: i32) -> (i32, i32) {
    %c0_i32 = arith.constant 0 : i32
    %c0_i32_0 = arith.constant 0 : i32
    %c0_i32_1 = arith.constant 0 : i32
    return %c0_i32, %c0_i32_0 : i32, i32
  }
  func.func @transform_3(%arg0: i32) -> (i32, i32) {
    %c0_i32 = arith.constant 0 : i32
    %c0_i32_0 = arith.constant 0 : i32
    return %c0_i32, %arg0 : i32, i32
  }
}

</mosaic_0001>

<llo_original>
// kernel: tpu_custom_call.1
$region0: #{tpu_custom_call.1}
  #allocation0 [shape = 'u32[]', space=smem, size = 0x4, offset = 0x4, fixed_abs, tag = 'smem constant byte address 0x4 - core index']
  #allocation1 [shape = 'u32[72,128]{1,0:T(1,128)}', space=vmem, size = 0x9000, scoped, tag = 'internal scratch']
  %s0 = inlined_call_operand.hbm [shape: f32[8,40], index: 0, kind: input, shape index: {}]
  %s1 = inlined_call_operand.hbm [shape: f32[40,8192], index: 1, kind: input, shape index: {}]
  %s2 = inlined_call_operand.vmem [shape: f32[8,1], index: 2, kind: input, shape index: {}]
  %s3 = inlined_call_operand.hbm [shape: f32[8,8192], index: 3, kind: output, shape index: {}]
  %s4 = sld [smem:[#allocation0]]
  $region53: #{tpu_custom_call.1} parent=0
    _
  %s6 = ssub.s32 1, %s4
  %s7 = scalar_select 0, %s6, %s4
  $region1: #{tpu_custom_call.1} parent=0
    #allocation2 [shape = 'u8[4096]{0}', space=vmem, size = 0x1000, scoped, tag = 'input window, operand 0, single buffered']
    #allocation3 [shape = 's32[2]{0}', space=sflag, size = 0x8, scoped, tag = 'scoped memory for tpu_custom_call.1']
    #allocation4 [shape = 's32[2]{0}', space=sflag, size = 0x8, scoped, tag = 'scoped memory for tpu_custom_call.1']
    #allocation5 [shape = 'u8[1310720]{0}', space=vmem, size = 0x140000, scoped, tag = 'input window, operand 1']
    #allocation6 [shape = 's32[2]{0}', space=sflag, size = 0x8, scoped, tag = 'scoped memory for tpu_custom_call.1']
    #allocation7 [shape = 'u8[262144]{0}', space=vmem, size = 0x40000, scoped, tag = 'output window, operand 0']
    %8 = vsyncpa [#allocation3], 0
    %9 = vsyncpa [#allocation6], 0
    %s10 = scalar_lea.sflag [#allocation6], 1
    %11 = vsyncpa %s10, 0
    %12 = vsyncpa [#allocation4], 0
    %s13 = scalar_lea.sflag [#allocation4], 1
    %14 = vsyncpa %s13, 0
    loop: start=0, step=1, limit=4
    $region2: #{tpu_custom_call.1} parent=1 // loop_pre_header
      _
    $region3: #{tpu_custom_call.1} parent=1 // loop_header
      %s16 = sphi 0, %s20
      %p17 = scmp.ge.s32.totalorder %s16, 4
      %s24 = sphi 0, %s24
      %s26 = sphi 0, %s24
      %s27 = sphi 0, %s26
      %s41 = sphi 0, %s27
      %s47 = sphi 0, %s49
      %s50 = sphi 0, %s47
      %s51 = sphi 0, %s50
      %s67 = sphi 0, %s51
      %s71 = sphi 0, %s71
      %s73 = sphi 0, %s71
      %s74 = sphi 0, %s73
      %s88 = sphi 0, %s74
      %s94 = sphi 0, %s96
      %s97 = sphi 0, %s94
      %s98 = sphi 0, %s97
      %s114 = sphi 0, %s98
    $region4: #{tpu_custom_call.1} parent=1 // loop_header_branch
      %19 = sbr.rel (%p17) target = $region8
    $region5: #{tpu_custom_call.1} parent=1 // loop_body
      %s21 = ssub.s32 %s16, 1
      %s22 = ssub.s32 %s16, 2
      %s23 = sadd.s32 %s16, 1
      %s25 = sadd.s32 %s24, 1
      %p28 = scmp.eq.s32.totalorder %s16, 1
      %p29 = scmp.ne.s32.totalorder %s24, %s26
      %p30 = scmp.eq.s32.totalorder %s16, 0
      %p31 = por %p29, %p30
      %p32 = scmp.ne.s32.totalorder %s24, %s26
      %p33 = scmp.eq.s32.totalorder %s21, 1
      %p34 = por %p32, %p33
      %p35 = scmp.ne.s32.totalorder %s26, %s27
      %p36 = scmp.eq.s32.totalorder %s21, 0
      %p37 = por %p35, %p36
      %p38 = scmp.ne.s32.totalorder %s26, %s27
      %p39 = scmp.eq.s32.totalorder %s22, 1
      %p40 = por %p38, %p39
      %p42 = scmp.ne.s32.totalorder %s27, %s41
      %p43 = scmp.eq.s32.totalorder %s22, 0
      %p44 = por %p42, %p43
      %s45 = ssub.s32 %s16, %s23
      %p46 = scmp.eq.s32.totalorder %s45, 0
      %s48 = sadd.s32 %s47, 1
      %s49 = scalar_select %p46, %s47, %s48
      %p52 = pneg %p46
      %p53 = scmp.eq.s32.totalorder %s16, 1
      %p54 = por %p52, %p53
      %p55 = scmp.ne.s32.totalorder %s47, %s50
      %p56 = scmp.eq.s32.totalorder %s16, 0
      %p57 = por %p55, %p56
      %p58 = scmp.ne.s32.totalorder %s47, %s50
      %p59 = scmp.eq.s32.totalorder %s21, 1
      %p60 = por %p58, %p59
      %p61 = scmp.ne.s32.totalorder %s50, %s51
      %p62 = scmp.eq.s32.totalorder %s21, 0
      %p63 = por %p61, %p62
      %p64 = scmp.ne.s32.totalorder %s50, %s51
      %p65 = scmp.eq.s32.totalorder %s22, 1
      %p66 = por %p64, %p65
      %p68 = scmp.ne.s32.totalorder %s51, %s67
      %p69 = scmp.eq.s32.totalorder %s22, 0
      %p70 = por %p68, %p69
      %s72 = sadd.s32 %s71, 1
      %p75 = scmp.eq.s32.totalorder %s16, 1
      %p76 = scmp.ne.s32.totalorder %s71, %s73
      %p77 = scmp.eq.s32.totalorder %s16, 0
      %p78 = por %p76, %p77
      %p79 = scmp.ne.s32.totalorder %s71, %s73
      %p80 = scmp.eq.s32.totalorder %s21, 1
      %p81 = por %p79, %p80
      %p82 = scmp.ne.s32.totalorder %s73, %s74
      %p83 = scmp.eq.s32.totalorder %s21, 0
      %p84 = por %p82, %p83
      %p85 = scmp.ne.s32.totalorder %s73, %s74
      %p86 = scmp.eq.s32.totalorder %s22, 1
      %p87 = por %p85, %p86
      %p89 = scmp.ne.s32.totalorder %s74, %s88
      %p90 = scmp.eq.s32.totalorder %s22, 0
      %p91 = por %p89, %p90
      %s92 = ssub.s32 %s16, %s23
      %p93 = scmp.eq.s32.totalorder %s92, 0
      %s95 = sadd.s32 %s94, 1
      %s96 = scalar_select %p93, %s94, %s95
      %p99 = pneg %p93
      %p100 = scmp.eq.s32.totalorder %s16, 1
      %p101 = por %p99, %p100
      %p102 = scmp.ne.s32.totalorder %s94, %s97
      %p103 = scmp.eq.s32.totalorder %s16, 0
      %p104 = por %p102, %p103
      %p105 = scmp.ne.s32.totalorder %s94, %s97
      %p106 = scmp.eq.s32.totalorder %s21, 1
      %p107 = por %p105, %p106
      %p108 = scmp.ne.s32.totalorder %s97, %s98
      %p109 = scmp.eq.s32.totalorder %s21, 0
      %p110 = por %p108, %p109
      %p111 = scmp.ne.s32.totalorder %s97, %s98
      %p112 = scmp.eq.s32.totalorder %s22, 1
      %p113 = por %p111, %p112
      %p115 = scmp.ne.s32.totalorder %s98, %s114
      %p116 = scmp.eq.s32.totalorder %s22, 0
      %p117 = por %p115, %p116
      %p118 = scmp.le.s32.totalorder 1, %s16
      %p119 = scmp.lt.s32.totalorder %s16, 3
      %p120 = pnand %p118, %p119
      %p121 = pneg %p120
      // Predicated region
      $region9: #{tpu_custom_call.1} parent=5 // pred_check
        _
      $region10: #{tpu_custom_call.1} parent=5 // pred_check_branch
        %123 = sbr.rel (%p120) target = $region12
      $region11: #{tpu_custom_call.1} parent=5 // pred_region
        %s124 = ssub.s32 %s16, 1
        // Predicated region
        $region13: #{tpu_custom_call.1} parent=11 // pred_check
          %p125 = pneg %p37
        $region14: #{tpu_custom_call.1} parent=11 // pred_check_branch
          %127 = sbr.rel (%p125) target = $region16
        $region15: #{tpu_custom_call.1} parent=11 // pred_region
          %129 = vsyncadd [#allocation3], 0
          %s131 = sshll.u32 %s0, 4
          %s132 = int_to_ptr.hbm [resolvable:$true] %s131
          %s133 = sshll.u32 [#allocation2], 4
          %s134 = int_to_ptr.vmem [resolvable:$true] %s133
          %136 = dma.hbm_to_vmem [thread:$0]  %s132, 128, %s134, [#allocation3]
        $region16: #{tpu_custom_call.1} parent=11 // pred_fallthru
          _
        // Predicated region
        $region17: #{tpu_custom_call.1} parent=11 // pred_check
          %p137 = pneg %p84
        $region18: #{tpu_custom_call.1} parent=11 // pred_check_branch
          %139 = sbr.rel (%p137) target = $region20
        $region19: #{tpu_custom_call.1} parent=11 // pred_region
          _
        $region20: #{tpu_custom_call.1} parent=11 // pred_fallthru
          _
      $region12: #{tpu_custom_call.1} parent=5 // pred_fallthru
        _
      %p140 = scmp.lt.s32.totalorder %s16, 2
      // Predicated region
      $region21: #{tpu_custom_call.1} parent=5 // pred_check
        %p141 = pneg %p140
      $region22: #{tpu_custom_call.1} parent=5 // pred_check_branch
        %143 = sbr.rel (%p141) target = $region24
      $region23: #{tpu_custom_call.1} parent=5 // pred_region
        // Predicated region
        $region25: #{tpu_custom_call.1} parent=23 // pred_check
          %p144 = pneg %p57
        $region26: #{tpu_custom_call.1} parent=23 // pred_check_branch
          %146 = sbr.rel (%p144) target = $region28
        $region27: #{tpu_custom_call.1} parent=23 // pred_region
          %s147 = sand.u32 %s47, 1
          %s148 = scalar_lea.sflag [#allocation6], %s147
          %s149 = sand.u32 %s47, 1
          %s150 = smul.addr %s149, 1280
          %s151 = scalar_lea.vmem [#allocation5], %s150
          %s152 = smul.u32 32, %s16
          %154 = vsyncadd %s148, 0
          %s155 = smul.addr %s152, 8
          %s156 = scalar_lea.hbm %s1, %s155
          %s157 = sshll.u32 %s156, 4
          %s158 = int_to_ptr.hbm [resolvable:$true] %s157
          %s159 = sshll.u32 %s151, 4
          %s160 = int_to_ptr.vmem [resolvable:$true] %s159
          %165 = dma.hbm_to_vmem [thread:$0]  %s158, 20480, %s160, %s148, 8192, 4096, 256
        $region28: #{tpu_custom_call.1} parent=23 // pred_fallthru
          _
      $region24: #{tpu_custom_call.1} parent=5 // pred_fallthru
        _
      %p166 = scmp.le.s32.totalorder 1, %s16
      %p167 = scmp.lt.s32.totalorder %s16, 3
      %p168 = pnand %p166, %p167
      %p169 = pneg %p168
      // Predicated region
      $region29: #{tpu_custom_call.1} parent=5 // pred_check
        _
      $region30: #{tpu_custom_call.1} parent=5 // pred_check_branch
        %171 = sbr.rel (%p168) target = $region32
      $region31: #{tpu_custom_call.1} parent=5 // pred_region
        %s172 = ssub.s32 %s16, 1
        // Predicated region
        $region33: #{tpu_custom_call.1} parent=31 // pred_check
          %p173 = pneg %p37
        $region34: #{tpu_custom_call.1} parent=31 // pred_check_branch
          %175 = sbr.rel (%p173) target = $region36
        $region35: #{tpu_custom_call.1} parent=31 // pred_region
          %177 = dma.done [#allocation3], 128
        $region36: #{tpu_custom_call.1} parent=31 // pred_fallthru
          _
        %s178 = sand.u32 %s50, 1
        %s179 = scalar_lea.sflag [#allocation6], %s178
        %s180 = sand.u32 %s50, 1
        %s181 = smul.addr %s180, 1280
        %s182 = scalar_lea.vmem [#allocation5], %s181
        // Predicated region
        $region37: #{tpu_custom_call.1} parent=31 // pred_check
          %p183 = pneg %p63
        $region38: #{tpu_custom_call.1} parent=31 // pred_check_branch
          %185 = sbr.rel (%p183) target = $region40
        $region39: #{tpu_custom_call.1} parent=31 // pred_region
          %187 = dma.done %s179, 20480
        $region40: #{tpu_custom_call.1} parent=31 // pred_fallthru
          _
        %p188 = pneg %p37
        %p189 = pneg %p34
        %s190 = sand.u32 %s50, 1
        %s191 = scalar_lea.sflag [#allocation6], %s190
        %s192 = sand.u32 %s50, 1
        %s193 = smul.addr %s192, 1280
        %s194 = scalar_lea.vmem [#allocation5], %s193
        %p195 = pneg %p63
        %p196 = pneg %p60
        %p197 = pneg %p84
        %p198 = pneg %p81
        %p199 = pneg %p110
        %p200 = pneg %p107
        %s201 = sand.u32 %s97, 1
        %s202 = scalar_lea.sflag [#allocation4], %s201
        %s203 = sand.u32 %s97, 1
        %s204 = smul.addr %s203, 256
        %s205 = scalar_lea.vmem [#allocation7], %s204
        %s206 = smul.u32 32, %s21
        %s207 = smul.u32 32, %s21
        %v208 = vld [vmem:[#allocation2] sm:$0xff]
        %v209 = vld [vmem:[%s182] sm:$0xff]
        %v210 = vld [vmem:[%s182 + $0x8] sm:$0xff]
        %v211 = vld [vmem:[%s182 + $0x10] sm:$0xff]
        %v212 = vld [vmem:[%s182 + $0x18] sm:$0xff]
        %v213 = vld [vmem:[%s182 + $0x20] sm:$0xff]
        %v214 = vld [vmem:[%s182 + $0x28] sm:$0xff]
        %v215 = vld [vmem:[%s182 + $0x30] sm:$0xff]
        %v216 = vld [vmem:[%s182 + $0x38] sm:$0xff]
        %v217 = vld [vmem:[%s182 + $0x40] sm:$0xff]
        %v218 = vld [vmem:[%s182 + $0x48] sm:$0xff]
        %v219 = vld [vmem:[%s182 + $0x50] sm:$0xff]
        %v220 = vld [vmem:[%s182 + $0x58] sm:$0xff]
        %v221 = vld [vmem:[%s182 + $0x60] sm:$0xff]
        %v222 = vld [vmem:[%s182 + $0x68] sm:$0xff]
        %v223 = vld [vmem:[%s182 + $0x70] sm:$0xff]
        %v224 = vld [vmem:[%s182 + $0x78] sm:$0xff]
        %v225 = vld [vmem:[%s182 + $0x80] sm:$0xff]
        %v226 = vld [vmem:[%s182 + $0x88] sm:$0xff]
        %v227 = vld [vmem:[%s182 + $0x90] sm:$0xff]
        %v228 = vld [vmem:[%s182 + $0x98] sm:$0xff]
        %v229 = vld [vmem:[%s182 + $0xa0] sm:$0xff]
        %v230 = vld [vmem:[%s182 + $0xa8] sm:$0xff]
        %v231 = vld [vmem:[%s182 + $0xb0] sm:$0xff]
        %v232 = vld [vmem:[%s182 + $0xb8] sm:$0xff]
        %v233 = vld [vmem:[%s182 + $0xc0] sm:$0xff]
        %v234 = vld [vmem:[%s182 + $0xc8] sm:$0xff]
        %v235 = vld [vmem:[%s182 + $0xd0] sm:$0xff]
        %v236 = vld [vmem:[%s182 + $0xd8] sm:$0xff]
        %v237 = vld [vmem:[%s182 + $0xe0] sm:$0xff]
        %v238 = vld [vmem:[%s182 + $0xe8] sm:$0xff]
        %v239 = vld [vmem:[%s182 + $0xf0] sm:$0xff]
        %v240 = vld [vmem:[%s182 + $0xf8] sm:$0xff]
        %v241 = vld [vmem:[%s182 + $0x100] sm:$0xff]
        %v242 = vld [vmem:[%s182 + $0x108] sm:$0xff]
        %v243 = vld [vmem:[%s182 + $0x110] sm:$0xff]
        %v244 = vld [vmem:[%s182 + $0x118] sm:$0xff]
        %v245 = vld [vmem:[%s182 + $0x120] sm:$0xff]
        %v246 = vld [vmem:[%s182 + $0x128] sm:$0xff]
        %v247 = vld [vmem:[%s182 + $0x130] sm:$0xff]
        %v248 = vld [vmem:[%s182 + $0x138] sm:$0xff]
        %v249 = vld [vmem:[%s182 + $0x140] sm:$0xff]
        %v250 = vld [vmem:[%s182 + $0x148] sm:$0xff]
        %v251 = vld [vmem:[%s182 + $0x150] sm:$0xff]
        %v252 = vld [vmem:[%s182 + $0x158] sm:$0xff]
        %v253 = vld [vmem:[%s182 + $0x160] sm:$0xff]
        %v254 = vld [vmem:[%s182 + $0x168] sm:$0xff]
        %v255 = vld [vmem:[%s182 + $0x170] sm:$0xff]
        %v256 = vld [vmem:[%s182 + $0x178] sm:$0xff]
        %v257 = vld [vmem:[%s182 + $0x180] sm:$0xff]
        %v258 = vld [vmem:[%s182 + $0x188] sm:$0xff]
        %v259 = vld [vmem:[%s182 + $0x190] sm:$0xff]
        %v260 = vld [vmem:[%s182 + $0x198] sm:$0xff]
        %v261 = vld [vmem:[%s182 + $0x1a0] sm:$0xff]
        %v262 = vld [vmem:[%s182 + $0x1a8] sm:$0xff]
        %v263 = vld [vmem:[%s182 + $0x1b0] sm:$0xff]
        %v264 = vld [vmem:[%s182 + $0x1b8] sm:$0xff]
        %v265 = vld [vmem:[%s182 + $0x1c0] sm:$0xff]
        %v266 = vld [vmem:[%s182 + $0x1c8] sm:$0xff]
        %v267 = vld [vmem:[%s182 + $0x1d0] sm:$0xff]
        %v268 = vld [vmem:[%s182 + $0x1d8] sm:$0xff]
        %v269 = vld [vmem:[%s182 + $0x1e0] sm:$0xff]
        %v270 = vld [vmem:[%s182 + $0x1e8] sm:$0xff]
        %v271 = vld [vmem:[%s182 + $0x1f0] sm:$0xff]
        %v272 = vld [vmem:[%s182 + $0x1f8] sm:$0xff]
        %v273 = vld [vmem:[%s182 + $0x200] sm:$0xff]
        %v274 = vld [vmem:[%s182 + $0x208] sm:$0xff]
        %v275 = vld [vmem:[%s182 + $0x210] sm:$0xff]
        %v276 = vld [vmem:[%s182 + $0x218] sm:$0xff]
        %v277 = vld [vmem:[%s182 + $0x220] sm:$0xff]
        %v278 = vld [vmem:[%s182 + $0x228] sm:$0xff]
        %v279 = vld [vmem:[%s182 + $0x230] sm:$0xff]
        %v280 = vld [vmem:[%s182 + $0x238] sm:$0xff]
        %v281 = vld [vmem:[%s182 + $0x240] sm:$0xff]
        %v282 = vld [vmem:[%s182 + $0x248] sm:$0xff]
        %v283 = vld [vmem:[%s182 + $0x250] sm:$0xff]
        %v284 = vld [vmem:[%s182 + $0x258] sm:$0xff]
        %v285 = vld [vmem:[%s182 + $0x260] sm:$0xff]
        %v286 = vld [vmem:[%s182 + $0x268] sm:$0xff]
        %v287 = vld [vmem:[%s182 + $0x270] sm:$0xff]
        %v288 = vld [vmem:[%s182 + $0x278] sm:$0xff]
        %v289 = vld [vmem:[%s182 + $0x280] sm:$0xff]
        %v290 = vld [vmem:[%s182 + $0x288] sm:$0xff]
        %v291 = vld [vmem:[%s182 + $0x290] sm:$0xff]
        %v292 = vld [vmem:[%s182 + $0x298] sm:$0xff]
        %v293 = vld [vmem:[%s182 + $0x2a0] sm:$0xff]
        %v294 = vld [vmem:[%s182 + $0x2a8] sm:$0xff]
        %v295 = vld [vmem:[%s182 + $0x2b0] sm:$0xff]
        %v296 = vld [vmem:[%s182 + $0x2b8] sm:$0xff]
        %v297 = vld [vmem:[%s182 + $0x2c0] sm:$0xff]
        %v298 = vld [vmem:[%s182 + $0x2c8] sm:$0xff]
        %v299 = vld [vmem:[%s182 + $0x2d0] sm:$0xff]
        %v300 = vld [vmem:[%s182 + $0x2d8] sm:$0xff]
        %v301 = vld [vmem:[%s182 + $0x2e0] sm:$0xff]
        %v302 = vld [vmem:[%s182 + $0x2e8] sm:$0xff]
        %v303 = vld [vmem:[%s182 + $0x2f0] sm:$0xff]
        %v304 = vld [vmem:[%s182 + $0x2f8] sm:$0xff]
        %v305 = vld [vmem:[%s182 + $0x300] sm:$0xff]
        %v306 = vld [vmem:[%s182 + $0x308] sm:$0xff]
        %v307 = vld [vmem:[%s182 + $0x310] sm:$0xff]
        %v308 = vld [vmem:[%s182 + $0x318] sm:$0xff]
        %v309 = vld [vmem:[%s182 + $0x320] sm:$0xff]
        %v310 = vld [vmem:[%s182 + $0x328] sm:$0xff]
        %v311 = vld [vmem:[%s182 + $0x330] sm:$0xff]
        %v312 = vld [vmem:[%s182 + $0x338] sm:$0xff]
        %v313 = vld [vmem:[%s182 + $0x340] sm:$0xff]
        %v314 = vld [vmem:[%s182 + $0x348] sm:$0xff]
        %v315 = vld [vmem:[%s182 + $0x350] sm:$0xff]
        %v316 = vld [vmem:[%s182 + $0x358] sm:$0xff]
        %v317 = vld [vmem:[%s182 + $0x360] sm:$0xff]
        %v318 = vld [vmem:[%s182 + $0x368] sm:$0xff]
        %v319 = vld [vmem:[%s182 + $0x370] sm:$0xff]
        %v320 = vld [vmem:[%s182 + $0x378] sm:$0xff]
        %v321 = vld [vmem:[%s182 + $0x380] sm:$0xff]
        %v322 = vld [vmem:[%s182 + $0x388] sm:$0xff]
        %v323 = vld [vmem:[%s182 + $0x390] sm:$0xff]
        %v324 = vld [vmem:[%s182 + $0x398] sm:$0xff]
        %v325 = vld [vmem:[%s182 + $0x3a0] sm:$0xff]
        %v326 = vld [vmem:[%s182 + $0x3a8] sm:$0xff]
        %v327 = vld [vmem:[%s182 + $0x3b0] sm:$0xff]
        %v328 = vld [vmem:[%s182 + $0x3b8] sm:$0xff]
        %v329 = vld [vmem:[%s182 + $0x3c0] sm:$0xff]
        %v330 = vld [vmem:[%s182 + $0x3c8] sm:$0xff]
        %v331 = vld [vmem:[%s182 + $0x3d0] sm:$0xff]
        %v332 = vld [vmem:[%s182 + $0x3d8] sm:$0xff]
        %v333 = vld [vmem:[%s182 + $0x3e0] sm:$0xff]
        %v334 = vld [vmem:[%s182 + $0x3e8] sm:$0xff]
        %v335 = vld [vmem:[%s182 + $0x3f0] sm:$0xff]
        %v336 = vld [vmem:[%s182 + $0x3f8] sm:$0xff]
        %v337 = vld [vmem:[%s182 + $0x400] sm:$0xff]
        %v338 = vld [vmem:[%s182 + $0x408] sm:$0xff]
        %v339 = vld [vmem:[%s182 + $0x410] sm:$0xff]
        %v340 = vld [vmem:[%s182 + $0x418] sm:$0xff]
        %v341 = vld [vmem:[%s182 + $0x420] sm:$0xff]
        %v342 = vld [vmem:[%s182 + $0x428] sm:$0xff]
        %v343 = vld [vmem:[%s182 + $0x430] sm:$0xff]
        %v344 = vld [vmem:[%s182 + $0x438] sm:$0xff]
        %v345 = vld [vmem:[%s182 + $0x440] sm:$0xff]
        %v346 = vld [vmem:[%s182 + $0x448] sm:$0xff]
        %v347 = vld [vmem:[%s182 + $0x450] sm:$0xff]
        %v348 = vld [vmem:[%s182 + $0x458] sm:$0xff]
        %v349 = vld [vmem:[%s182 + $0x460] sm:$0xff]
        %v350 = vld [vmem:[%s182 + $0x468] sm:$0xff]
        %v351 = vld [vmem:[%s182 + $0x470] sm:$0xff]
        %v352 = vld [vmem:[%s182 + $0x478] sm:$0xff]
        %v353 = vld [vmem:[%s182 + $0x480] sm:$0xff]
        %v354 = vld [vmem:[%s182 + $0x488] sm:$0xff]
        %v355 = vld [vmem:[%s182 + $0x490] sm:$0xff]
        %v356 = vld [vmem:[%s182 + $0x498] sm:$0xff]
        %v357 = vld [vmem:[%s182 + $0x4a0] sm:$0xff]
        %v358 = vld [vmem:[%s182 + $0x4a8] sm:$0xff]
        %v359 = vld [vmem:[%s182 + $0x4b0] sm:$0xff]
        %v360 = vld [vmem:[%s182 + $0x4b8] sm:$0xff]
        %v361 = vld [vmem:[%s182 + $0x4c0] sm:$0xff]
        %v362 = vld [vmem:[%s182 + $0x4c8] sm:$0xff]
        %v363 = vld [vmem:[%s182 + $0x4d0] sm:$0xff]
        %v364 = vld [vmem:[%s182 + $0x4d8] sm:$0xff]
        %v365 = vld [vmem:[%s182 + $0x4e0] sm:$0xff]
        %v366 = vld [vmem:[%s182 + $0x4e8] sm:$0xff]
        %v367 = vld [vmem:[%s182 + $0x4f0] sm:$0xff]
        %v368 = vld [vmem:[%s182 + $0x4f8] sm:$0xff]
        %v369 = vld [vmem:[%s2] sm:$0xff]
        %371 = vset.pattern.permute.xlu0 0
        %372 = vperm.xlu0 %371, %v369
        %v373 = vpop.permute.xlu0 %372
        %vm375 = vcmask 326656
        %v377 = vsel %vm375, %v208, 0
        %379 = vmatpush.msra.mxu0 0.0
        %380 = vmatpush.msra.mxu0 0.0
        %381 = vmatpush.msra.mxu0 0.0
        %382 = vmatpush.msra.mxu0 0.0
        %383 = vmatpush.msra.mxu0 0.0
        %384 = vmatpush.msra.mxu0 0.0
        %385 = vmatpush.msra.mxu0 0.0
        %386 = vmatpush.msra.mxu0 0.0
        %387 = vmatpush.msra.mxu0 0.0
        %388 = vmatpush.msra.mxu0 0.0
        %389 = vmatpush.msra.mxu0 0.0
        %390 = vmatpush.msra.mxu0 %v337
        %391 = vmatpush.msra.mxu0 %v305
        %392 = vmatpush.msra.mxu0 %v273
        %393 = vmatpush.msra.mxu0 %v241
        %394 = vmatpush.msra.mxu0 %v209
        %395 = vmatmul.f32.gmra.mxu0 %v377
        %v396 = vpop.f32.mrf.mxu0
        %v397 = vadd.f32 %v373, %v396
        %398 = vdwg.mxu0
        %399 = vmatpush.msra.mxu0 0.0
        %400 = vmatpush.msra.mxu0 0.0
        %401 = vmatpush.msra.mxu0 0.0
        %402 = vmatpush.msra.mxu0 0.0
        %403 = vmatpush.msra.mxu0 0.0
        %404 = vmatpush.msra.mxu0 0.0
        %405 = vmatpush.msra.mxu0 0.0
        %406 = vmatpush.msra.mxu0 0.0
        %407 = vmatpush.msra.mxu0 0.0
        %408 = vmatpush.msra.mxu0 0.0
        %409 = vmatpush.msra.mxu0 0.0
        %410 = vmatpush.msra.mxu0 %v338
        %411 = vmatpush.msra.mxu0 %v306
        %412 = vmatpush.msra.mxu0 %v274
        %413 = vmatpush.msra.mxu0 %v242
        %414 = vmatpush.msra.mxu0 %v210
        %415 = vmatmul.f32.gmra.mxu0 %v377
        %v416 = vpop.f32.mrf.mxu0
        %v417 = vadd.f32 %v373, %v416
        %418 = vdwg.mxu0
        %419 = vmatpush.msra.mxu0 0.0
        %420 = vmatpush.msra.mxu0 0.0
        %421 = vmatpush.msra.mxu0 0.0
        %422 = vmatpush.msra.mxu0 0.0
        %423 = vmatpush.msra.mxu0 0.0
        %424 = vmatpush.msra.mxu0 0.0
        %425 = vmatpush.msra.mxu0 0.0
        %426 = vmatpush.msra.mxu0 0.0
        %427 = vmatpush.msra.mxu0 0.0
        %428 = vmatpush.msra.mxu0 0.0
        %429 = vmatpush.msra.mxu0 0.0
        %430 = vmatpush.msra.mxu0 %v339
        %431 = vmatpush.msra.mxu0 %v307
        %432 = vmatpush.msra.mxu0 %v275
        %433 = vmatpush.msra.mxu0 %v243
        %434 = vmatpush.msra.mxu0 %v211
        %435 = vmatmul.f32.gmra.mxu0 %v377
        %v436 = vpop.f32.mrf.mxu0
        %v437 = vadd.f32 %v373, %v436
        %438 = vdwg.mxu0
        %439 = vmatpush.msra.mxu0 0.0
        %440 = vmatpush.msra.mxu0 0.0
        %441 = vmatpush.msra.mxu0 0.0
        %442 = vmatpush.msra.mxu0 0.0
        %443 = vmatpush.msra.mxu0 0.0
        %444 = vmatpush.msra.mxu0 0.0
        %445 = vmatpush.msra.mxu0 0.0
        %446 = vmatpush.msra.mxu0 0.0
        %447 = vmatpush.msra.mxu0 0.0
        %448 = vmatpush.msra.mxu0 0.0
        %449 = vmatpush.msra.mxu0 0.0
        %450 = vmatpush.msra.mxu0 %v340
        %451 = vmatpush.msra.mxu0 %v308
        %452 = vmatpush.msra.mxu0 %v276
        %453 = vmatpush.msra.mxu0 %v244
        %454 = vmatpush.msra.mxu0 %v212
        %455 = vmatmul.f32.gmra.mxu0 %v377
        %v456 = vpop.f32.mrf.mxu0
        %v457 = vadd.f32 %v373, %v456
        %458 = vdwg.mxu0
        %459 = vmatpush.msra.mxu0 0.0
        %460 = vmatpush.msra.mxu0 0.0
        %461 = vmatpush.msra.mxu0 0.0
        %462 = vmatpush.msra.mxu0 0.0
        %463 = vmatpush.msra.mxu0 0.0
        %464 = vmatpush.msra.mxu0 0.0
        %465 = vmatpush.msra.mxu0 0.0
        %466 = vmatpush.msra.mxu0 0.0
        %467 = vmatpush.msra.mxu0 0.0
        %468 = vmatpush.msra.mxu0 0.0
        %469 = vmatpush.msra.mxu0 0.0
        %470 = vmatpush.msra.mxu0 %v341
        %471 = vmatpush.msra.mxu0 %v309
        %472 = vmatpush.msra.mxu0 %v277
        %473 = vmatpush.msra.mxu0 %v245
        %474 = vmatpush.msra.mxu0 %v213
        %475 = vmatmul.f32.gmra.mxu0 %v377
        %v476 = vpop.f32.mrf.mxu0
        %v477 = vadd.f32 %v373, %v476
        %478 = vdwg.mxu0
        %479 = vmatpush.msra.mxu0 0.0
        %480 = vmatpush.msra.mxu0 0.0
        %481 = vmatpush.msra.mxu0 0.0
        %482 = vmatpush.msra.mxu0 0.0
        %483 = vmatpush.msra.mxu0 0.0
        %484 = vmatpush.msra.mxu0 0.0
        %485 = vmatpush.msra.mxu0 0.0
        %486 = vmatpush.msra.mxu0 0.0
        %487 = vmatpush.msra.mxu0 0.0
        %488 = vmatpush.msra.mxu0 0.0
        %489 = vmatpush.msra.mxu0 0.0
        %490 = vmatpush.msra.mxu0 %v342
        %491 = vmatpush.msra.mxu0 %v310
        %492 = vmatpush.msra.mxu0 %v278
        %493 = vmatpush.msra.mxu0 %v246
        %494 = vmatpush.msra.mxu0 %v214
        %495 = vmatmul.f32.gmra.mxu0 %v377
        %v496 = vpop.f32.mrf.mxu0
        %v497 = vadd.f32 %v373, %v496
        %498 = vdwg.mxu0
        %499 = vmatpush.msra.mxu0 0.0
        %500 = vmatpush.msra.mxu0 0.0
        %501 = vmatpush.msra.mxu0 0.0
        %502 = vmatpush.msra.mxu0 0.0
        %503 = vmatpush.msra.mxu0 0.0
        %504 = vmatpush.msra.mxu0 0.0
        %505 = vmatpush.msra.mxu0 0.0
        %506 = vmatpush.msra.mxu0 0.0
        %507 = vmatpush.msra.mxu0 0.0
        %508 = vmatpush.msra.mxu0 0.0
        %509 = vmatpush.msra.mxu0 0.0
        %510 = vmatpush.msra.mxu0 %v343
        %511 = vmatpush.msra.mxu0 %v311
        %512 = vmatpush.msra.mxu0 %v279
        %513 = vmatpush.msra.mxu0 %v247
        %514 = vmatpush.msra.mxu0 %v215
        %515 = vmatmul.f32.gmra.mxu0 %v377
        %v516 = vpop.f32.mrf.mxu0
        %v517 = vadd.f32 %v373, %v516
        %518 = vdwg.mxu0
        %519 = vmatpush.msra.mxu0 0.0
        %520 = vmatpush.msra.mxu0 0.0
        %521 = vmatpush.msra.mxu0 0.0
        %522 = vmatpush.msra.mxu0 0.0
        %523 = vmatpush.msra.mxu0 0.0
        %524 = vmatpush.msra.mxu0 0.0
        %525 = vmatpush.msra.mxu0 0.0
        %526 = vmatpush.msra.mxu0 0.0
        %527 = vmatpush.msra.mxu0 0.0
        %528 = vmatpush.msra.mxu0 0.0
        %529 = vmatpush.msra.mxu0 0.0
        %530 = vmatpush.msra.mxu0 %v344
        %531 = vmatpush.msra.mxu0 %v312
        %532 = vmatpush.msra.mxu0 %v280
        %533 = vmatpush.msra.mxu0 %v248
        %534 = vmatpush.msra.mxu0 %v216
        %535 = vmatmul.f32.gmra.mxu0 %v377
        %v536 = vpop.f32.mrf.mxu0
        %v537 = vadd.f32 %v373, %v536
        %538 = vdwg.mxu0
        %539 = vmatpush.msra.mxu0 0.0
        %540 = vmatpush.msra.mxu0 0.0
        %541 = vmatpush.msra.mxu0 0.0
        %542 = vmatpush.msra.mxu0 0.0
        %543 = vmatpush.msra.mxu0 0.0
        %544 = vmatpush.msra.mxu0 0.0
        %545 = vmatpush.msra.mxu0 0.0
        %546 = vmatpush.msra.mxu0 0.0
        %547 = vmatpush.msra.mxu0 0.0
        %548 = vmatpush.msra.mxu0 0.0
        %549 = vmatpush.msra.mxu0 0.0
        %550 = vmatpush.msra.mxu0 %v345
        %551 = vmatpush.msra.mxu0 %v313
        %552 = vmatpush.msra.mxu0 %v281
        %553 = vmatpush.msra.mxu0 %v249
        %554 = vmatpush.msra.mxu0 %v217
        %555 = vmatmul.f32.gmra.mxu0 %v377
        %v556 = vpop.f32.mrf.mxu0
        %v557 = vadd.f32 %v373, %v556
        %558 = vdwg.mxu0
        %559 = vmatpush.msra.mxu0 0.0
        %560 = vmatpush.msra.mxu0 0.0
        %561 = vmatpush.msra.mxu0 0.0
        %562 = vmatpush.msra.mxu0 0.0
        %563 = vmatpush.msra.mxu0 0.0
        %564 = vmatpush.msra.mxu0 0.0
        %565 = vmatpush.msra.mxu0 0.0
        %566 = vmatpush.msra.mxu0 0.0
        %567 = vmatpush.msra.mxu0 0.0
        %568 = vmatpush.msra.mxu0 0.0
        %569 = vmatpush.msra.mxu0 0.0
        %570 = vmatpush.msra.mxu0 %v346
        %571 = vmatpush.msra.mxu0 %v314
        %572 = vmatpush.msra.mxu0 %v282
        %573 = vmatpush.msra.mxu0 %v250
        %574 = vmatpush.msra.mxu0 %v218
        %575 = vmatmul.f32.gmra.mxu0 %v377
        %v576 = vpop.f32.mrf.mxu0
        %v577 = vadd.f32 %v373, %v576
        %578 = vdwg.mxu0
        %579 = vmatpush.msra.mxu0 0.0
        %580 = vmatpush.msra.mxu0 0.0
        %581 = vmatpush.msra.mxu0 0.0
        %582 = vmatpush.msra.mxu0 0.0
        %583 = vmatpush.msra.mxu0 0.0
        %584 = vmatpush.msra.mxu0 0.0
        %585 = vmatpush.msra.mxu0 0.0
        %586 = vmatpush.msra.mxu0 0.0
        %587 = vmatpush.msra.mxu0 0.0
        %588 = vmatpush.msra.mxu0 0.0
        %589 = vmatpush.msra.mxu0 0.0
        %590 = vmatpush.msra.mxu0 %v347
        %591 = vmatpush.msra.mxu0 %v315
        %592 = vmatpush.msra.mxu0 %v283
        %593 = vmatpush.msra.mxu0 %v251
        %594 = vmatpush.msra.mxu0 %v219
        %595 = vmatmul.f32.gmra.mxu0 %v377
        %v596 = vpop.f32.mrf.mxu0
        %v597 = vadd.f32 %v373, %v596
        %598 = vdwg.mxu0
        %599 = vmatpush.msra.mxu0 0.0
        %600 = vmatpush.msra.mxu0 0.0
        %601 = vmatpush.msra.mxu0 0.0
        %602 = vmatpush.msra.mxu0 0.0
        %603 = vmatpush.msra.mxu0 0.0
        %604 = vmatpush.msra.mxu0 0.0
        %605 = vmatpush.msra.mxu0 0.0
        %606 = vmatpush.msra.mxu0 0.0
        %607 = vmatpush.msra.mxu0 0.0
        %608 = vmatpush.msra.mxu0 0.0
        %609 = vmatpush.msra.mxu0 0.0
        %610 = vmatpush.msra.mxu0 %v348
        %611 = vmatpush.msra.mxu0 %v316
        %612 = vmatpush.msra.mxu0 %v284
        %613 = vmatpush.msra.mxu0 %v252
        %614 = vmatpush.msra.mxu0 %v220
        %615 = vmatmul.f32.gmra.mxu0 %v377
        %v616 = vpop.f32.mrf.mxu0
        %v617 = vadd.f32 %v373, %v616
        %618 = vdwg.mxu0
        %619 = vmatpush.msra.mxu0 0.0
        %620 = vmatpush.msra.mxu0 0.0
        %621 = vmatpush.msra.mxu0 0.0
        %622 = vmatpush.msra.mxu0 0.0
        %623 = vmatpush.msra.mxu0 0.0
        %624 = vmatpush.msra.mxu0 0.0
        %625 = vmatpush.msra.mxu0 0.0
        %626 = vmatpush.msra.mxu0 0.0
        %627 = vmatpush.msra.mxu0 0.0
        %628 = vmatpush.msra.mxu0 0.0
        %629 = vmatpush.msra.mxu0 0.0
        %630 = vmatpush.msra.mxu0 %v349
        %631 = vmatpush.msra.mxu0 %v317
        %632 = vmatpush.msra.mxu0 %v285
        %633 = vmatpush.msra.mxu0 %v253
        %634 = vmatpush.msra.mxu0 %v221
        %635 = vmatmul.f32.gmra.mxu0 %v377
        %v636 = vpop.f32.mrf.mxu0
        %v637 = vadd.f32 %v373, %v636
        %638 = vdwg.mxu0
        %639 = vmatpush.msra.mxu0 0.0
        %640 = vmatpush.msra.mxu0 0.0
        %641 = vmatpush.msra.mxu0 0.0
        %642 = vmatpush.msra.mxu0 0.0
        %643 = vmatpush.msra.mxu0 0.0
        %644 = vmatpush.msra.mxu0 0.0
        %645 = vmatpush.msra.mxu0 0.0
        %646 = vmatpush.msra.mxu0 0.0
        %647 = vmatpush.msra.mxu0 0.0
        %648 = vmatpush.msra.mxu0 0.0
        %649 = vmatpush.msra.mxu0 0.0
        %650 = vmatpush.msra.mxu0 %v350
        %651 = vmatpush.msra.mxu0 %v318
        %652 = vmatpush.msra.mxu0 %v286
        %653 = vmatpush.msra.mxu0 %v254
        %654 = vmatpush.msra.mxu0 %v222
        %655 = vmatmul.f32.gmra.mxu0 %v377
        %v656 = vpop.f32.mrf.mxu0
        %v657 = vadd.f32 %v373, %v656
        %658 = vdwg.mxu0
        %659 = vmatpush.msra.mxu0 0.0
        %660 = vmatpush.msra.mxu0 0.0
        %661 = vmatpush.msra.mxu0 0.0
        %662 = vmatpush.msra.mxu0 0.0
        %663 = vmatpush.msra.mxu0 0.0
        %664 = vmatpush.msra.mxu0 0.0
        %665 = vmatpush.msra.mxu0 0.0
        %666 = vmatpush.msra.mxu0 0.0
        %667 = vmatpush.msra.mxu0 0.0
        %668 = vmatpush.msra.mxu0 0.0
        %669 = vmatpush.msra.mxu0 0.0
        %670 = vmatpush.msra.mxu0 %v351
        %671 = vmatpush.msra.mxu0 %v319
        %672 = vmatpush.msra.mxu0 %v287
        %673 = vmatpush.msra.mxu0 %v255
        %674 = vmatpush.msra.mxu0 %v223
        %675 = vmatmul.f32.gmra.mxu0 %v377
        %v676 = vpop.f32.mrf.mxu0
        %v677 = vadd.f32 %v373, %v676
        %678 = vdwg.mxu0
        %679 = vmatpush.msra.mxu0 0.0
        %680 = vmatpush.msra.mxu0 0.0
        %681 = vmatpush.msra.mxu0 0.0
        %682 = vmatpush.msra.mxu0 0.0
        %683 = vmatpush.msra.mxu0 0.0
        %684 = vmatpush.msra.mxu0 0.0
        %685 = vmatpush.msra.mxu0 0.0
        %686 = vmatpush.msra.mxu0 0.0
        %687 = vmatpush.msra.mxu0 0.0
        %688 = vmatpush.msra.mxu0 0.0
        %689 = vmatpush.msra.mxu0 0.0
        %690 = vmatpush.msra.mxu0 %v352
        %691 = vmatpush.msra.mxu0 %v320
        %692 = vmatpush.msra.mxu0 %v288
        %693 = vmatpush.msra.mxu0 %v256
        %694 = vmatpush.msra.mxu0 %v224
        %695 = vmatmul.f32.gmra.mxu0 %v377
        %v696 = vpop.f32.mrf.mxu0
        %v697 = vadd.f32 %v373, %v696
        %698 = vdwg.mxu0
        %699 = vmatpush.msra.mxu0 0.0
        %700 = vmatpush.msra.mxu0 0.0
        %701 = vmatpush.msra.mxu0 0.0
        %702 = vmatpush.msra.mxu0 0.0
        %703 = vmatpush.msra.mxu0 0.0
        %704 = vmatpush.msra.mxu0 0.0
        %705 = vmatpush.msra.mxu0 0.0
        %706 = vmatpush.msra.mxu0 0.0
        %707 = vmatpush.msra.mxu0 0.0
        %708 = vmatpush.msra.mxu0 0.0
        %709 = vmatpush.msra.mxu0 0.0
        %710 = vmatpush.msra.mxu0 %v353
        %711 = vmatpush.msra.mxu0 %v321
        %712 = vmatpush.msra.mxu0 %v289
        %713 = vmatpush.msra.mxu0 %v257
        %714 = vmatpush.msra.mxu0 %v225
        %715 = vmatmul.f32.gmra.mxu0 %v377
        %v716 = vpop.f32.mrf.mxu0
        %v717 = vadd.f32 %v373, %v716
        %718 = vdwg.mxu0
        %719 = vmatpush.msra.mxu0 0.0
        %720 = vmatpush.msra.mxu0 0.0
        %721 = vmatpush.msra.mxu0 0.0
        %722 = vmatpush.msra.mxu0 0.0
        %723 = vmatpush.msra.mxu0 0.0
        %724 = vmatpush.msra.mxu0 0.0
        %725 = vmatpush.msra.mxu0 0.0
        %726 = vmatpush.msra.mxu0 0.0
        %727 = vmatpush.msra.mxu0 0.0
        %728 = vmatpush.msra.mxu0 0.0
        %729 = vmatpush.msra.mxu0 0.0
        %730 = vmatpush.msra.mxu0 %v354
        %731 = vmatpush.msra.mxu0 %v322
        %732 = vmatpush.msra.mxu0 %v290
        %733 = vmatpush.msra.mxu0 %v258
        %734 = vmatpush.msra.mxu0 %v226
        %735 = vmatmul.f32.gmra.mxu0 %v377
        %v736 = vpop.f32.mrf.mxu0
        %v737 = vadd.f32 %v373, %v736
        %738 = vdwg.mxu0
        %739 = vmatpush.msra.mxu0 0.0
        %740 = vmatpush.msra.mxu0 0.0
        %741 = vmatpush.msra.mxu0 0.0
        %742 = vmatpush.msra.mxu0 0.0
        %743 = vmatpush.msra.mxu0 0.0
        %744 = vmatpush.msra.mxu0 0.0
        %745 = vmatpush.msra.mxu0 0.0
        %746 = vmatpush.msra.mxu0 0.0
        %747 = vmatpush.msra.mxu0 0.0
        %748 = vmatpush.msra.mxu0 0.0
        %749 = vmatpush.msra.mxu0 0.0
        %750 = vmatpush.msra.mxu0 %v355
        %751 = vmatpush.msra.mxu0 %v323
        %752 = vmatpush.msra.mxu0 %v291
        %753 = vmatpush.msra.mxu0 %v259
        %754 = vmatpush.msra.mxu0 %v227
        %755 = vmatmul.f32.gmra.mxu0 %v377
        %v756 = vpop.f32.mrf.mxu0
        %v757 = vadd.f32 %v373, %v756
        %758 = vdwg.mxu0
        %759 = vmatpush.msra.mxu0 0.0
        %760 = vmatpush.msra.mxu0 0.0
        %761 = vmatpush.msra.mxu0 0.0
        %762 = vmatpush.msra.mxu0 0.0
        %763 = vmatpush.msra.mxu0 0.0
        %764 = vmatpush.msra.mxu0 0.0
        %765 = vmatpush.msra.mxu0 0.0
        %766 = vmatpush.msra.mxu0 0.0
        %767 = vmatpush.msra.mxu0 0.0
        %768 = vmatpush.msra.mxu0 0.0
        %769 = vmatpush.msra.mxu0 0.0
        %770 = vmatpush.msra.mxu0 %v356
        %771 = vmatpush.msra.mxu0 %v324
        %772 = vmatpush.msra.mxu0 %v292
        %773 = vmatpush.msra.mxu0 %v260
        %774 = vmatpush.msra.mxu0 %v228
        %775 = vmatmul.f32.gmra.mxu0 %v377
        %v776 = vpop.f32.mrf.mxu0
        %v777 = vadd.f32 %v373, %v776
        %778 = vdwg.mxu0
        %779 = vmatpush.msra.mxu0 0.0
        %780 = vmatpush.msra.mxu0 0.0
        %781 = vmatpush.msra.mxu0 0.0
        %782 = vmatpush.msra.mxu0 0.0
        %783 = vmatpush.msra.mxu0 0.0
        %784 = vmatpush.msra.mxu0 0.0
        %785 = vmatpush.msra.mxu0 0.0
        %786 = vmatpush.msra.mxu0 0.0
        %787 = vmatpush.msra.mxu0 0.0
        %788 = vmatpush.msra.mxu0 0.0
        %789 = vmatpush.msra.mxu0 0.0
        %790 = vmatpush.msra.mxu0 %v357
        %791 = vmatpush.msra.mxu0 %v325
        %792 = vmatpush.msra.mxu0 %v293
        %793 = vmatpush.msra.mxu0 %v261
        %794 = vmatpush.msra.mxu0 %v229
        %795 = vmatmul.f32.gmra.mxu0 %v377
        %v796 = vpop.f32.mrf.mxu0
        %v797 = vadd.f32 %v373, %v796
        %798 = vdwg.mxu0
        %799 = vmatpush.msra.mxu0 0.0
        %800 = vmatpush.msra.mxu0 0.0
        %801 = vmatpush.msra.mxu0 0.0
        %802 = vmatpush.msra.mxu0 0.0
        %803 = vmatpush.msra.mxu0 0.0
        %804 = vmatpush.msra.mxu0 0.0
        %805 = vmatpush.msra.mxu0 0.0
        %806 = vmatpush.msra.mxu0 0.0
        %807 = vmatpush.msra.mxu0 0.0
        %808 = vmatpush.msra.mxu0 0.0
        %809 = vmatpush.msra.mxu0 0.0
        %810 = vmatpush.msra.mxu0 %v358
        %811 = vmatpush.msra.mxu0 %v326
        %812 = vmatpush.msra.mxu0 %v294
        %813 = vmatpush.msra.mxu0 %v262
        %814 = vmatpush.msra.mxu0 %v230
        %815 = vmatmul.f32.gmra.mxu0 %v377
        %v816 = vpop.f32.mrf.mxu0
        %v817 = vadd.f32 %v373, %v816
        %818 = vdwg.mxu0
        %819 = vmatpush.msra.mxu0 0.0
        %820 = vmatpush.msra.mxu0 0.0
        %821 = vmatpush.msra.mxu0 0.0
        %822 = vmatpush.msra.mxu0 0.0
        %823 = vmatpush.msra.mxu0 0.0
        %824 = vmatpush.msra.mxu0 0.0
        %825 = vmatpush.msra.mxu0 0.0
        %826 = vmatpush.msra.mxu0 0.0
        %827 = vmatpush.msra.mxu0 0.0
        %828 = vmatpush.msra.mxu0 0.0
        %829 = vmatpush.msra.mxu0 0.0
        %830 = vmatpush.msra.mxu0 %v359
        %831 = vmatpush.msra.mxu0 %v327
        %832 = vmatpush.msra.mxu0 %v295
        %833 = vmatpush.msra.mxu0 %v263
        %834 = vmatpush.msra.mxu0 %v231
        %835 = vmatmul.f32.gmra.mxu0 %v377
        %v836 = vpop.f32.mrf.mxu0
        %v837 = vadd.f32 %v373, %v836
        %838 = vdwg.mxu0
        %839 = vmatpush.msra.mxu0 0.0
        %840 = vmatpush.msra.mxu0 0.0
        %841 = vmatpush.msra.mxu0 0.0
        %842 = vmatpush.msra.mxu0 0.0
        %843 = vmatpush.msra.mxu0 0.0
        %844 = vmatpush.msra.mxu0 0.0
        %845 = vmatpush.msra.mxu0 0.0
        %846 = vmatpush.msra.mxu0 0.0
        %847 = vmatpush.msra.mxu0 0.0
        %848 = vmatpush.msra.mxu0 0.0
        %849 = vmatpush.msra.mxu0 0.0
        %850 = vmatpush.msra.mxu0 %v360
        %851 = vmatpush.msra.mxu0 %v328
        %852 = vmatpush.msra.mxu0 %v296
        %853 = vmatpush.msra.mxu0 %v264
        %854 = vmatpush.msra.mxu0 %v232
        %855 = vmatmul.f32.gmra.mxu0 %v377
        %v856 = vpop.f32.mrf.mxu0
        %v857 = vadd.f32 %v373, %v856
        %858 = vdwg.mxu0
        %859 = vmatpush.msra.mxu0 0.0
        %860 = vmatpush.msra.mxu0 0.0
        %861 = vmatpush.msra.mxu0 0.0
        %862 = vmatpush.msra.mxu0 0.0
        %863 = vmatpush.msra.mxu0 0.0
        %864 = vmatpush.msra.mxu0 0.0
        %865 = vmatpush.msra.mxu0 0.0
        %866 = vmatpush.msra.mxu0 0.0
        %867 = vmatpush.msra.mxu0 0.0
        %868 = vmatpush.msra.mxu0 0.0
        %869 = vmatpush.msra.mxu0 0.0
        %870 = vmatpush.msra.mxu0 %v361
        %871 = vmatpush.msra.mxu0 %v329
        %872 = vmatpush.msra.mxu0 %v297
        %873 = vmatpush.msra.mxu0 %v265
        %874 = vmatpush.msra.mxu0 %v233
        %875 = vmatmul.f32.gmra.mxu0 %v377
        %v876 = vpop.f32.mrf.mxu0
        %v877 = vadd.f32 %v373, %v876
        %878 = vdwg.mxu0
        %879 = vmatpush.msra.mxu0 0.0
        %880 = vmatpush.msra.mxu0 0.0
        %881 = vmatpush.msra.mxu0 0.0
        %882 = vmatpush.msra.mxu0 0.0
        %883 = vmatpush.msra.mxu0 0.0
        %884 = vmatpush.msra.mxu0 0.0
        %885 = vmatpush.msra.mxu0 0.0
        %886 = vmatpush.msra.mxu0 0.0
        %887 = vmatpush.msra.mxu0 0.0
        %888 = vmatpush.msra.mxu0 0.0
        %889 = vmatpush.msra.mxu0 0.0
        %890 = vmatpush.msra.mxu0 %v362
        %891 = vmatpush.msra.mxu0 %v330
        %892 = vmatpush.msra.mxu0 %v298
        %893 = vmatpush.msra.mxu0 %v266
        %894 = vmatpush.msra.mxu0 %v234
        %895 = vmatmul.f32.gmra.mxu0 %v377
        %v896 = vpop.f32.mrf.mxu0
        %v897 = vadd.f32 %v373, %v896
        %898 = vdwg.mxu0
        %899 = vmatpush.msra.mxu0 0.0
        %900 = vmatpush.msra.mxu0 0.0
        %901 = vmatpush.msra.mxu0 0.0
        %902 = vmatpush.msra.mxu0 0.0
        %903 = vmatpush.msra.mxu0 0.0
        %904 = vmatpush.msra.mxu0 0.0
        %905 = vmatpush.msra.mxu0 0.0
        %906 = vmatpush.msra.mxu0 0.0
        %907 = vmatpush.msra.mxu0 0.0
        %908 = vmatpush.msra.mxu0 0.0
        %909 = vmatpush.msra.mxu0 0.0
        %910 = vmatpush.msra.mxu0 %v363
        %911 = vmatpush.msra.mxu0 %v331
        %912 = vmatpush.msra.mxu0 %v299
        %913 = vmatpush.msra.mxu0 %v267
        %914 = vmatpush.msra.mxu0 %v235
        %915 = vmatmul.f32.gmra.mxu0 %v377
        %v916 = vpop.f32.mrf.mxu0
        %v917 = vadd.f32 %v373, %v916
        %918 = vdwg.mxu0
        %919 = vmatpush.msra.mxu0 0.0
        %920 = vmatpush.msra.mxu0 0.0
        %921 = vmatpush.msra.mxu0 0.0
        %922 = vmatpush.msra.mxu0 0.0
        %923 = vmatpush.msra.mxu0 0.0
        %924 = vmatpush.msra.mxu0 0.0
        %925 = vmatpush.msra.mxu0 0.0
        %926 = vmatpush.msra.mxu0 0.0
        %927 = vmatpush.msra.mxu0 0.0
        %928 = vmatpush.msra.mxu0 0.0
        %929 = vmatpush.msra.mxu0 0.0
        %930 = vmatpush.msra.mxu0 %v364
        %931 = vmatpush.msra.mxu0 %v332
        %932 = vmatpush.msra.mxu0 %v300
        %933 = vmatpush.msra.mxu0 %v268
        %934 = vmatpush.msra.mxu0 %v236
        %935 = vmatmul.f32.gmra.mxu0 %v377
        %v936 = vpop.f32.mrf.mxu0
        %v937 = vadd.f32 %v373, %v936
        %938 = vdwg.mxu0
        %939 = vmatpush.msra.mxu0 0.0
        %940 = vmatpush.msra.mxu0 0.0
        %941 = vmatpush.msra.mxu0 0.0
        %942 = vmatpush.msra.mxu0 0.0
        %943 = vmatpush.msra.mxu0 0.0
        %944 = vmatpush.msra.mxu0 0.0
        %945 = vmatpush.msra.mxu0 0.0
        %946 = vmatpush.msra.mxu0 0.0
        %947 = vmatpush.msra.mxu0 0.0
        %948 = vmatpush.msra.mxu0 0.0
        %949 = vmatpush.msra.mxu0 0.0
        %950 = vmatpush.msra.mxu0 %v365
        %951 = vmatpush.msra.mxu0 %v333
        %952 = vmatpush.msra.mxu0 %v301
        %953 = vmatpush.msra.mxu0 %v269
        %954 = vmatpush.msra.mxu0 %v237
        %955 = vmatmul.f32.gmra.mxu0 %v377
        %v956 = vpop.f32.mrf.mxu0
        %v957 = vadd.f32 %v373, %v956
        %958 = vdwg.mxu0
        %959 = vmatpush.msra.mxu0 0.0
        %960 = vmatpush.msra.mxu0 0.0
        %961 = vmatpush.msra.mxu0 0.0
        %962 = vmatpush.msra.mxu0 0.0
        %963 = vmatpush.msra.mxu0 0.0
        %964 = vmatpush.msra.mxu0 0.0
        %965 = vmatpush.msra.mxu0 0.0
        %966 = vmatpush.msra.mxu0 0.0
        %967 = vmatpush.msra.mxu0 0.0
        %968 = vmatpush.msra.mxu0 0.0
        %969 = vmatpush.msra.mxu0 0.0
        %970 = vmatpush.msra.mxu0 %v366
        %971 = vmatpush.msra.mxu0 %v334
        %972 = vmatpush.msra.mxu0 %v302
        %973 = vmatpush.msra.mxu0 %v270
        %974 = vmatpush.msra.mxu0 %v238
        %975 = vmatmul.f32.gmra.mxu0 %v377
        %v976 = vpop.f32.mrf.mxu0
        %v977 = vadd.f32 %v373, %v976
        %978 = vdwg.mxu0
        %979 = vmatpush.msra.mxu0 0.0
        %980 = vmatpush.msra.mxu0 0.0
        %981 = vmatpush.msra.mxu0 0.0
        %982 = vmatpush.msra.mxu0 0.0
        %983 = vmatpush.msra.mxu0 0.0
        %984 = vmatpush.msra.mxu0 0.0
        %985 = vmatpush.msra.mxu0 0.0
        %986 = vmatpush.msra.mxu0 0.0
        %987 = vmatpush.msra.mxu0 0.0
        %988 = vmatpush.msra.mxu0 0.0
        %989 = vmatpush.msra.mxu0 0.0
        %990 = vmatpush.msra.mxu0 %v367
        %991 = vmatpush.msra.mxu0 %v335
        %992 = vmatpush.msra.mxu0 %v303
        %993 = vmatpush.msra.mxu0 %v271
        %994 = vmatpush.msra.mxu0 %v239
        %995 = vmatmul.f32.gmra.mxu0 %v377
        %v996 = vpop.f32.mrf.mxu0
        %v997 = vadd.f32 %v373, %v996
        %998 = vdwg.mxu0
        %999 = vmatpush.msra.mxu0 0.0
        %1000 = vmatpush.msra.mxu0 0.0
        %1001 = vmatpush.msra.mxu0 0.0
        %1002 = vmatpush.msra.mxu0 0.0
        %1003 = vmatpush.msra.mxu0 0.0
        %1004 = vmatpush.msra.mxu0 0.0
        %1005 = vmatpush.msra.mxu0 0.0
        %1006 = vmatpush.msra.mxu0 0.0
        %1007 = vmatpush.msra.mxu0 0.0
        %1008 = vmatpush.msra.mxu0 0.0
        %1009 = vmatpush.msra.mxu0 0.0
        %1010 = vmatpush.msra.mxu0 %v368
        %1011 = vmatpush.msra.mxu0 %v336
        %1012 = vmatpush.msra.mxu0 %v304
        %1013 = vmatpush.msra.mxu0 %v272
        %1014 = vmatpush.msra.mxu0 %v240
        %1015 = vmatmul.f32.gmra.mxu0 %v377
        %v1016 = vpop.f32.mrf.mxu0
        %v1017 = vadd.f32 %v373, %v1016
        %1018 = vdwg.mxu0
        %1019 = vst [vmem:[%s205] sm:$0xff] %v397
        %1020 = vst [vmem:[%s205 + $0x8] sm:$0xff] %v417
        %1021 = vst [vmem:[%s205 + $0x10] sm:$0xff] %v437
        %1022 = vst [vmem:[%s205 + $0x18] sm:$0xff] %v457
        %1023 = vst [vmem:[%s205 + $0x20] sm:$0xff] %v477
        %1024 = vst [vmem:[%s205 + $0x28] sm:$0xff] %v497
        %1025 = vst [vmem:[%s205 + $0x30] sm:$0xff] %v517
        %1026 = vst [vmem:[%s205 + $0x38] sm:$0xff] %v537
        %1027 = vst [vmem:[%s205 + $0x40] sm:$0xff] %v557
        %1028 = vst [vmem:[%s205 + $0x48] sm:$0xff] %v577
        %1029 = vst [vmem:[%s205 + $0x50] sm:$0xff] %v597
        %1030 = vst [vmem:[%s205 + $0x58] sm:$0xff] %v617
        %1031 = vst [vmem:[%s205 + $0x60] sm:$0xff] %v637
        %1032 = vst [vmem:[%s205 + $0x68] sm:$0xff] %v657
        %1033 = vst [vmem:[%s205 + $0x70] sm:$0xff] %v677
        %1034 = vst [vmem:[%s205 + $0x78] sm:$0xff] %v697
        %1035 = vst [vmem:[%s205 + $0x80] sm:$0xff] %v717
        %1036 = vst [vmem:[%s205 + $0x88] sm:$0xff] %v737
        %1037 = vst [vmem:[%s205 + $0x90] sm:$0xff] %v757
        %1038 = vst [vmem:[%s205 + $0x98] sm:$0xff] %v777
        %1039 = vst [vmem:[%s205 + $0xa0] sm:$0xff] %v797
        %1040 = vst [vmem:[%s205 + $0xa8] sm:$0xff] %v817
        %1041 = vst [vmem:[%s205 + $0xb0] sm:$0xff] %v837
        %1042 = vst [vmem:[%s205 + $0xb8] sm:$0xff] %v857
        %1043 = vst [vmem:[%s205 + $0xc0] sm:$0xff] %v877
        %1044 = vst [vmem:[%s205 + $0xc8] sm:$0xff] %v897
        %1045 = vst [vmem:[%s205 + $0xd0] sm:$0xff] %v917
        %1046 = vst [vmem:[%s205 + $0xd8] sm:$0xff] %v937
        %1047 = vst [vmem:[%s205 + $0xe0] sm:$0xff] %v957
        %1048 = vst [vmem:[%s205 + $0xe8] sm:$0xff] %v977
        %1049 = vst [vmem:[%s205 + $0xf0] sm:$0xff] %v997
        %1050 = vst [vmem:[%s205 + $0xf8] sm:$0xff] %v1017
        %s1051 = sand.u32 %s97, 1
        %s1052 = scalar_lea.sflag [#allocation4], %s1051
        %s1053 = sand.u32 %s97, 1
        %s1054 = smul.addr %s1053, 256
        %s1055 = scalar_lea.vmem [#allocation7], %s1054
        // Predicated region
        $region41: #{tpu_custom_call.1} parent=31 // pred_check
          %p1056 = pneg %p107
        $region42: #{tpu_custom_call.1} parent=31 // pred_check_branch
          %1058 = sbr.rel (%p1056) target = $region44
        $region43: #{tpu_custom_call.1} parent=31 // pred_region
          %s1059 = smul.u32 32, %s21
          %1061 = vsyncadd %s1052, 0
          %s1062 = smul.addr %s1059, 8
          %s1063 = scalar_lea.hbm %s3, %s1062
          %s1065 = sshll.u32 %s1055, 4
          %s1066 = int_to_ptr.vmem [resolvable:$true] %s1065
          %s1067 = sshll.u32 %s1063, 4
          %s1068 = int_to_ptr.hbm [resolvable:$true] %s1067
          %1070 = dma.vmem_to_hbm [thread:$0]  %s1066, 4096, %s1068, %s1052
        $region44: #{tpu_custom_call.1} parent=31 // pred_fallthru
          _
      $region32: #{tpu_custom_call.1} parent=5 // pred_fallthru
        _
      %p1071 = scmp.le.s32.totalorder 2, %s16
      // Predicated region
      $region45: #{tpu_custom_call.1} parent=5 // pred_check
        %p1072 = pneg %p1071
      $region46: #{tpu_custom_call.1} parent=5 // pred_check_branch
        %1074 = sbr.rel (%p1072) target = $region48
      $region47: #{tpu_custom_call.1} parent=5 // pred_region
        %s1075 = ssub.s32 %s16, 2
        // Predicated region
        $region49: #{tpu_custom_call.1} parent=47 // pred_check
          %p1076 = pneg %p113
        $region50: #{tpu_custom_call.1} parent=47 // pred_check_branch
          %1078 = sbr.rel (%p1076) target = $region52
        $region51: #{tpu_custom_call.1} parent=47 // pred_region
          %s1079 = sand.u32 %s98, 1
          %s1080 = scalar_lea.sflag [#allocation4], %s1079
          %s1081 = sand.u32 %s98, 1
          %s1082 = smul.addr %s1081, 256
          %s1083 = scalar_lea.vmem [#allocation7], %s1082
          %1085 = dma.done %s1080, 4096
        $region52: #{tpu_custom_call.1} parent=47 // pred_fallthru
          _
      $region48: #{tpu_custom_call.1} parent=5 // pred_fallthru
        _
    $region6: #{tpu_custom_call.1} parent=1 // loop_footer
      %s20 = sadd.s32 1, %s16
    $region7: #{tpu_custom_call.1} parent=1 // loop_footer_branch
      %15 = sbr.rel target = $region3
    $region8: #{tpu_custom_call.1} parent=1 // loop_exit
      _
    %1086 = vsyncpa [#allocation3], 1
    %s1087 = scalar_lea.sflag [#allocation3], 1
    %1088 = vsyncpa %s1087, 1
    %1089 = vsyncpa [#allocation6], 1
    %s1090 = scalar_lea.sflag [#allocation6], 1
    %1091 = vsyncpa %s1090, 1
    %1092 = vsyncpa [#allocation4], 1
    %s1093 = scalar_lea.sflag [#allocation4], 1
    %1094 = vsyncpa %s1093, 1

</llo_original>
